<compile_context>
chip_gen: v5e
topology: v5e:2x2
jax: 0.10.0
libtpu: 0.0.40
codegen_flags: <defaults>
</compile_context>

<pallas_src>
import functools

import jax
import jax.numpy as jnp
from jax.experimental import pallas as pl
from jax.experimental.pallas import tpu as pltpu

PRED_DIM = 3   # predictor output features (module spec)
PRED_MM = 8    # predictor matmul width (w3/b3 zero-padded to a sublane multiple)


def _round_up(n, m):
    return ((n + m - 1) // m) * m


def _vmem_capacity_bytes():
    """Physical per-core VMEM, with a conservative v7x-class fallback."""
    try:
        cap = getattr(pltpu.get_tpu_info(), "vmem_capacity_bytes", None)
        if cap:
            return int(cap)
    except Exception:
        pass
    return 64 * 1024 * 1024   # assume the smallest-VMEM generation (v7x)


def _choose_tile_b(batch, d, hidden, vmem_cap):
    """Largest multiple-of-8 batch tile that (a) fits a generation-aware VMEM
    budget and (b) leaves the grid with >= 2 steps so v7x megacore sharding
    has work for both TensorCores."""
    # Tile budget: half of physical VMEM, hard-capped at ~40 MiB so a tile
    # sized on v5e/v6e (128 MiB physical) still fits v7x (64 MiB physical)
    # with headroom for compiler-internal scratch.
    budget = min(vmem_cap // 2, 40 * 1024 * 1024)
    # Conservative per-row VMEM accounting: every (rows, features) array is
    # lane-padded to >=128 lanes in VMEM; 3 streamed arrays double-buffered
    # (x in, weights out, pred out) plus ~8 tile-sized f32 intermediates
    # (h, logits, exp, weights, selected, pred, bf16 casts).
    lanes = max(128, _round_up(max(d, hidden, PRED_MM), 128))
    bytes_per_row = 4 * lanes * (3 * 2 + 8)
    tile = budget // max(bytes_per_row, 1)
    # >= 2 grid steps (ideally even) for v7x's two TensorCores.
    half_batch = _round_up(-(-batch // 2), 8)
    tile = min(tile, half_batch)
    tile = max(8, (tile // 8) * 8)
    return int(tile)


def joint_linear_kernel(x_ref, w1_ref, b1_ref, w2_ref, b2_ref, w3_ref, b3_ref,
                        pred_ref, weights_ref, *, matmul_dtype):
    x = x_ref[...]                                            # (TB, D) f32

    # ---- selector: Linear -> ReLU -> Linear -> softmax(dim=-1) ----
    h = jnp.dot(x.astype(matmul_dtype), w1_ref[...],
                preferred_element_type=jnp.float32) + b1_ref[...]
    h = jnp.maximum(h, 0.0)                                   # ReLU
    logits = jnp.dot(h.astype(matmul_dtype), w2_ref[...],
                     preferred_element_type=jnp.float32) + b2_ref[...]

    # numerically-stable softmax over the last axis (all f32)
    m = jnp.max(logits, axis=-1, keepdims=True)
    e = jnp.exp(logits - m)
    denom = jnp.sum(e, axis=-1, keepdims=True)
    weights = e * pl.reciprocal(denom, approx=True)           # EUP vrcp

    # ---- feature selection + predictor ----
    selected = x * weights                                    # f32
    pred = jnp.dot(selected.astype(matmul_dtype), w3_ref[...],
                   preferred_element_type=jnp.float32) + b3_ref[...]  # (TB, PRED_MM)

    # Store only the 3 real predictor columns (12 B/row of HBM writeback).
    pred_ref[...] = pred[:, :PRED_DIM].astype(pred_ref.dtype)
    weights_ref[...] = weights.astype(weights_ref.dtype)


def prepare_params(params, matmul_dtype=jnp.bfloat16):
    """Zero-pad the predictor to PRED_MM columns (regular MXU shape) and cast
    the matmul weight matrices to the MXU dtype. Biases stay f32 (added after
    the f32 accumulate)."""
    d = params["w3"].shape[0]
    w3p = jnp.zeros((d, PRED_MM), jnp.float32).at[:, :PRED_DIM].set(params["w3"])
    b3p = jnp.zeros((1, PRED_MM), jnp.float32).at[:, :PRED_DIM].set(params["b3"])
    return dict(
        w1=params["w1"].astype(matmul_dtype), b1=params["b1"],
        w2=params["w2"].astype(matmul_dtype), b2=params["b2"],
        w3=w3p.astype(matmul_dtype), b3=b3p,
    )


def joint_linear_forward(x, params, *, tile_b=None, matmul_dtype=jnp.bfloat16,
                         weights_dtype=jnp.float32):
    """x: (B, input_dim) f32. params: f32 dict of selector/predictor weights
    stored as (in, out). Returns (pred (B, 3) f32, weights (B, input_dim) f32).

    weights_dtype=jnp.bfloat16 halves the second-largest HBM stream if the
    caller tolerates bf16 softmax weights (returned upcast to f32)."""
    b, d = x.shape
    h = params["w1"].shape[1]
    kp = prepare_params(params, matmul_dtype)

    vmem_cap = _vmem_capacity_bytes()
    if tile_b is None:
        tile_b = _choose_tile_b(b, d, h, vmem_cap)
    tile_b = max(8, (min(tile_b, _round_up(b, 8)) // 8) * 8)
    n_tiles = pl.cdiv(b, tile_b)

    # Raise the scoped VMEM limit past the per-generation defaults
    # (v5e 16 MiB / v6e,v7x 32 MiB) but stay well under physical capacity
    # (v5e/v6e 128 MiB, v7x 64 MiB).
    vmem_limit = int(min(vmem_cap * 3 // 4, 64 * 1024 * 1024))

    resident = lambda shape: pl.BlockSpec(shape, lambda i: (0, 0))  # stays in VMEM
    tiled = lambda shape: pl.BlockSpec(shape, lambda i: (i, 0))     # streamed

    param_bytes = sum(int(v.size) * v.dtype.itemsize for v in kp.values())
    cost = pl.CostEstimate(
        flops=2 * b * (d * h + h * d + d * PRED_MM) + 6 * b * d,
        transcendentals=b * (d + 1),
        bytes_accessed=(b * d * 4                                    # x read
                        + b * d * jnp.dtype(weights_dtype).itemsize  # weights write
                        + b * PRED_DIM * 4                           # pred write
                        + param_bytes),
    )

    pred, weights = pl.pallas_call(
        functools.partial(joint_linear_kernel, matmul_dtype=matmul_dtype),
        grid=(n_tiles,),
        out_shape=(
            jax.ShapeDtypeStruct((b, PRED_DIM), jnp.float32),
            jax.ShapeDtypeStruct((b, d), weights_dtype),
        ),
        in_specs=[
            tiled((tile_b, d)),        # x: streamed per batch tile (default 2-deep buffer)
            resident((d, h)),          # w1
            resident((1, h)),          # b1
            resident((h, d)),          # w2
            resident((1, d)),          # b2
            resident((d, PRED_MM)),    # w3 (zero-padded to 8 cols)
            resident((1, PRED_MM)),    # b3 (zero-padded)
        ],
        out_specs=(
            tiled((tile_b, PRED_DIM)),  # pred: 3 real columns only
            tiled((tile_b, d)),         # selector weights
        ),
        compiler_params=pltpu.CompilerParams(
            dimension_semantics=("parallel",),   # v7x megacore; no-op on v5e/v6e
            vmem_limit_bytes=vmem_limit,
        ),
        cost_estimate=cost,
    )(x, kp["w1"], kp["b1"], kp["w2"], kp["b2"], kp["w3"], kp["b3"])

    if weights_dtype != jnp.float32:
        weights = weights.astype(jnp.float32)
    return pred, weights


def init_params(key, input_dim, hidden_dim):
    """Deterministic synthetic parameters matching nn.Linear init, stored as
    (in, out) so the kernel multiplies x @ W."""
    k1, k2, k3, k4, k5, k6 = jax.random.split(key, 6)

    def lin(kw, kb, fan_in, fan_out):
        bound = 1.0 / jnp.sqrt(fan_in)
        w = jax.random.uniform(kw, (fan_in, fan_out), jnp.float32, -bound, bound)
        b = jax.random.uniform(kb, (1, fan_out), jnp.float32, -bound, bound)
        return w, b

    w1, b1 = lin(k1, k2, input_dim, hidden_dim)   # selector Linear 1
    w2, b2 = lin(k3, k4, hidden_dim, input_dim)   # selector Linear 2
    w3, b3 = lin(k5, k6, input_dim, PRED_DIM)     # predictor
    return dict(w1=w1, b1=b1, w2=w2, b2=b2, w3=w3, b3=b3)


def reference_forward(x, params, matmul_dtype=jnp.float32):
    """Pure-JAX reference; `matmul_dtype` mirrors the kernel's MXU operand cast."""
    md = matmul_dtype
    h = jnp.dot(x.astype(md), params["w1"].astype(md),
                preferred_element_type=jnp.float32) + params["b1"]
    h = jnp.maximum(h, 0.0)
    logits = jnp.dot(h.astype(md), params["w2"].astype(md),
                     preferred_element_type=jnp.float32) + params["b2"]
    w = jax.nn.softmax(logits, axis=-1)
    pred = jnp.dot((x * w).astype(md), params["w3"].astype(md),
                   preferred_element_type=jnp.float32) + params["b3"]
    return pred, w


if __name__ == "__main__":
    key = jax.random.PRNGKey(0)
    batch, input_dim, hidden_dim = 256, 16, 32

    kx, kp = jax.random.split(key)
    x = jax.random.normal(kx, (batch, input_dim), jnp.float32)
    params = init_params(kp, input_dim, hidden_dim)

    # Auto-sized tile: the >=2-grid-steps clamp yields tile_b=128 / grid=(2,)
    # here, so the demo exercises the multi-step (and v7x two-core) pipeline.
    pred, weights = joint_linear_forward(x, params)
    jax.block_until_ready((pred, weights))

    assert pred.shape == (batch, PRED_DIM)
    assert weights.shape == (batch, input_dim)

    # Reference mirroring the kernel's bf16 matmul operands (f32 accumulate);
    # residual difference is the approx softmax reciprocal.
    pred_mm, w_mm = reference_forward(x, params, jnp.bfloat16)
    assert jnp.allclose(weights, w_mm, atol=2e-3, rtol=2e-3), "weights mismatch (mirrored ref)"
    assert jnp.allclose(pred, pred_mm, atol=2e-3, rtol=2e-3), "pred mismatch (mirrored ref)"

    # Full-f32 reference: confirms module-level semantics within bf16-matmul tolerance.
    pred32, w32 = reference_forward(x, params, jnp.float32)
    assert jnp.allclose(weights, w32, atol=5e-2), "weights mismatch (f32 ref)"
    assert jnp.allclose(pred, pred32, atol=5e-2), "pred mismatch (f32 ref)"

    print("KERNEL_OK")
</pallas_src>

<mosaic_0001>
module attributes {stable_mosaic.version = 11 : i64} {
  func.func @joint_linear_kernel(%arg0: i32, %arg1: memref<128x16xf32, #tpu.memory_space<vmem>>, %arg2: memref<16x32xbf16, #tpu.memory_space<vmem>>, %arg3: memref<1x32xf32, #tpu.memory_space<vmem>>, %arg4: memref<32x16xbf16, #tpu.memory_space<vmem>>, %arg5: memref<1x16xf32, #tpu.memory_space<vmem>>, %arg6: memref<16x8xbf16, #tpu.memory_space<vmem>>, %arg7: memref<1x8xf32, #tpu.memory_space<vmem>>, %arg8: memref<128x3xf32, #tpu.memory_space<vmem>>, %arg9: memref<128x16xf32, #tpu.memory_space<vmem>>) attributes {dimension_semantics = [#tpu.dimension_semantics<parallel>], iteration_bounds = array<i64: 2>, scalar_prefetch = 0 : i64, scratch_operands = 0 : i64, tpu.core_type = #tpu.core_type<tc>, window_params = [{transform_indices = @transform_0, window_bounds = array<i64: 128, 16>}, {pipeline_mode = #tpu.pipeline_mode<synchronous>, transform_indices = @transform_1, window_bounds = array<i64: 16, 32>}, {pipeline_mode = #tpu.pipeline_mode<synchronous>, transform_indices = @transform_2, window_bounds = array<i64: 1, 32>}, {pipeline_mode = #tpu.pipeline_mode<synchronous>, transform_indices = @transform_3, window_bounds = array<i64: 32, 16>}, {pipeline_mode = #tpu.pipeline_mode<synchronous>, transform_indices = @transform_4, window_bounds = array<i64: 1, 16>}, {pipeline_mode = #tpu.pipeline_mode<synchronous>, transform_indices = @transform_5, window_bounds = array<i64: 16, 8>}, {pipeline_mode = #tpu.pipeline_mode<synchronous>, transform_indices = @transform_6, window_bounds = array<i64: 1, 8>}, {transform_indices = @transform_7, window_bounds = array<i64: 128, 3>}, {transform_indices = @transform_8, window_bounds = array<i64: 128, 16>}]} {
    %c0 = arith.constant 0 : index
    %c0_0 = arith.constant 0 : index
    %0 = vector.load %arg1[%c0, %c0_0] : memref<128x16xf32, #tpu.memory_space<vmem>>, vector<128x16xf32>
    %1 = arith.truncf %0 : vector<128x16xf32> to vector<128x16xbf16>
    %c0_1 = arith.constant 0 : index
    %c0_2 = arith.constant 0 : index
    %2 = vector.load %arg2[%c0_1, %c0_2] : memref<16x32xbf16, #tpu.memory_space<vmem>>, vector<16x32xbf16>
    %cst = arith.constant dense<0.000000e+00> : vector<128x32xf32>
    %3 = tpu.matmul %1, %2, %cst {dimension_numbers = #tpu.dot_dimension_numbers<[1], [0], [0], [1], [0, 0, 1, 1], [], []>} : vector<128x16xbf16>, vector<16x32xbf16>, vector<128x32xf32> -> vector<128x32xf32>
    %c0_3 = arith.constant 0 : index
    %c0_4 = arith.constant 0 : index
    %4 = vector.load %arg3[%c0_3, %c0_4] : memref<1x32xf32, #tpu.memory_space<vmem>>, vector<1x32xf32>
    %5 = vector.broadcast %4 : vector<1x32xf32> to vector<128x32xf32>
    %6 = arith.addf %3, %5 : vector<128x32xf32>
    %cst_5 = arith.constant 0.000000e+00 : f32
    %7 = vector.broadcast %cst_5 : f32 to vector<128x32xf32>
    %8 = arith.maximumf %6, %7 : vector<128x32xf32>
    %9 = arith.truncf %8 : vector<128x32xf32> to vector<128x32xbf16>
    %c0_6 = arith.constant 0 : index
    %c0_7 = arith.constant 0 : index
    %10 = vector.load %arg4[%c0_6, %c0_7] : memref<32x16xbf16, #tpu.memory_space<vmem>>, vector<32x16xbf16>
    %cst_8 = arith.constant dense<0.000000e+00> : vector<128x16xf32>
    %11 = tpu.matmul %9, %10, %cst_8 {dimension_numbers = #tpu.dot_dimension_numbers<[1], [0], [0], [1], [0, 0, 1, 1], [], []>} : vector<128x32xbf16>, vector<32x16xbf16>, vector<128x16xf32> -> vector<128x16xf32>
    %c0_9 = arith.constant 0 : index
    %c0_10 = arith.constant 0 : index
    %12 = vector.load %arg5[%c0_9, %c0_10] : memref<1x16xf32, #tpu.memory_space<vmem>>, vector<1x16xf32>
    %13 = vector.broadcast %12 : vector<1x16xf32> to vector<128x16xf32>
    %14 = arith.addf %11, %13 : vector<128x16xf32>
    %cst_11 = arith.constant dense<0xFF800000> : vector<128xf32>
    %15 = vector.multi_reduction <maximumf>, %14, %cst_11 [1] : vector<128x16xf32> to vector<128xf32>
    %16 = vector.shape_cast %15 : vector<128xf32> to vector<128x1xf32>
    %17 = vector.broadcast %16 : vector<128x1xf32> to vector<128x16xf32>
    %18 = arith.subf %14, %17 : vector<128x16xf32>
    %19 = math.exp %18 : vector<128x16xf32>
    %cst_12 = arith.constant dense<0.000000e+00> : vector<128xf32>
    %20 = vector.multi_reduction <add>, %19, %cst_12 [1] : vector<128x16xf32> to vector<128xf32>
    %21 = vector.shape_cast %20 : vector<128xf32> to vector<128x1xf32>
    %22 = tpu.reciprocal %21 {approx = true} : vector<128x1xf32> -> vector<128x1xf32>
    %23 = vector.broadcast %22 : vector<128x1xf32> to vector<128x16xf32>
    %24 = arith.mulf %19, %23 : vector<128x16xf32>
    %25 = arith.mulf %0, %24 : vector<128x16xf32>
    %26 = arith.truncf %25 : vector<128x16xf32> to vector<128x16xbf16>
    %c0_13 = arith.constant 0 : index
    %c0_14 = arith.constant 0 : index
    %27 = vector.load %arg6[%c0_13, %c0_14] : memref<16x8xbf16, #tpu.memory_space<vmem>>, vector<16x8xbf16>
    %cst_15 = arith.constant dense<0.000000e+00> : vector<128x8xf32>
    %28 = tpu.matmul %26, %27, %cst_15 {dimension_numbers = #tpu.dot_dimension_numbers<[1], [0], [0], [1], [0, 0, 1, 1], [], []>} : vector<128x16xbf16>, vector<16x8xbf16>, vector<128x8xf32> -> vector<128x8xf32>
    %c0_16 = arith.constant 0 : index
    %c0_17 = arith.constant 0 : index
    %29 = vector.load %arg7[%c0_16, %c0_17] : memref<1x8xf32, #tpu.memory_space<vmem>>, vector<1x8xf32>
    %30 = vector.broadcast %29 : vector<1x8xf32> to vector<128x8xf32>
    %31 = arith.addf %28, %30 : vector<128x8xf32>
    %32 = vector.extract_strided_slice %31 {offsets = [0, 0], sizes = [128, 3], strides = [1, 1]} : vector<128x8xf32> to vector<128x3xf32>
    %c0_18 = arith.constant 0 : index
    %c0_19 = arith.constant 0 : index
    %33 = vector.load %arg8[%c0_18, %c0_19] : memref<128x3xf32, #tpu.memory_space<vmem>>, vector<128x3xf32>
    tpu.vector_store %arg8[%c0_18, %c0_19], %32 {strides = array<i32>} : memref<128x3xf32, #tpu.memory_space<vmem>>, vector<128x3xf32>,
    %c0_20 = arith.constant 0 : index
    %c0_21 = arith.constant 0 : index
    %34 = vector.load %arg9[%c0_20, %c0_21] : memref<128x16xf32, #tpu.memory_space<vmem>>, vector<128x16xf32>
    tpu.vector_store %arg9[%c0_20, %c0_21], %24 {strides = array<i32>} : memref<128x16xf32, #tpu.memory_space<vmem>>, vector<128x16xf32>,
    return
  }
  func.func @transform_0(%arg0: i32) -> (i32, i32) {
    %c0_i32 = arith.constant 0 : i32
    %c0_i32_0 = arith.constant 0 : i32
    return %arg0, %c0_i32 : i32, i32
  }
  func.func @transform_1(%arg0: i32) -> (i32, i32) {
    %c0_i32 = arith.constant 0 : i32
    %c0_i32_0 = arith.constant 0 : i32
    %c0_i32_1 = arith.constant 0 : i32
    return %c0_i32, %c0_i32_0 : i32, i32
  }
  func.func @transform_2(%arg0: i32) -> (i32, i32) {
    %c0_i32 = arith.constant 0 : i32
    %c0_i32_0 = arith.constant 0 : i32
    %c0_i32_1 = arith.constant 0 : i32
    return %c0_i32, %c0_i32_0 : i32, i32
  }
  func.func @transform_3(%arg0: i32) -> (i32, i32) {
    %c0_i32 = arith.constant 0 : i32
    %c0_i32_0 = arith.constant 0 : i32
    %c0_i32_1 = arith.constant 0 : i32
    return %c0_i32, %c0_i32_0 : i32, i32
  }
  func.func @transform_4(%arg0: i32) -> (i32, i32) {
    %c0_i32 = arith.constant 0 : i32
    %c0_i32_0 = arith.constant 0 : i32
    %c0_i32_1 = arith.constant 0 : i32
    return %c0_i32, %c0_i32_0 : i32, i32
  }
  func.func @transform_5(%arg0: i32) -> (i32, i32) {
    %c0_i32 = arith.constant 0 : i32
    %c0_i32_0 = arith.constant 0 : i32
    %c0_i32_1 = arith.constant 0 : i32
    return %c0_i32, %c0_i32_0 : i32, i32
  }
  func.func @transform_6(%arg0: i32) -> (i32, i32) {
    %c0_i32 = arith.constant 0 : i32
    %c0_i32_0 = arith.constant 0 : i32
    %c0_i32_1 = arith.constant 0 : i32
    return %c0_i32, %c0_i32_0 : i32, i32
  }
  func.func @transform_7(%arg0: i32) -> (i32, i32) {
    %c0_i32 = arith.constant 0 : i32
    %c0_i32_0 = arith.constant 0 : i32
    return %arg0, %c0_i32 : i32, i32
  }
  func.func @transform_8(%arg0: i32) -> (i32, i32) {
    %c0_i32 = arith.constant 0 : i32
    %c0_i32_0 = arith.constant 0 : i32
    return %arg0, %c0_i32 : i32, i32
  }
}

</mosaic_0001>

<llo_original>
// kernel: tpu_custom_call.1
$region0: #{tpu_custom_call.1}
  #allocation0 [shape = 'u32[]', space=smem, size = 0x4, offset = 0x4, fixed_abs, tag = 'smem constant byte address 0x4 - core index']
  #allocation1 [shape = 'u32[72,128]{1,0:T(1,128)}', space=vmem, size = 0x9000, scoped, tag = 'internal scratch']
  %s0 = inlined_call_operand.vmem [shape: f32[256,16], index: 0, kind: input, shape index: {}]
  %s1 = inlined_call_operand.vmem [shape: bf16[16,32], index: 1, kind: input, shape index: {}]
  %s2 = inlined_call_operand.vmem [shape: f32[1,32], index: 2, kind: input, shape index: {}]
  %s3 = inlined_call_operand.vmem [shape: bf16[32,16], index: 3, kind: input, shape index: {}]
  %s4 = inlined_call_operand.vmem [shape: f32[1,16], index: 4, kind: input, shape index: {}]
  %s5 = inlined_call_operand.vmem [shape: bf16[16,8], index: 5, kind: input, shape index: {}]
  %s6 = inlined_call_operand.vmem [shape: f32[1,8], index: 6, kind: input, shape index: {}]
  %s7 = inlined_call_operand.vmem [shape: f32[256,3], index: 7, kind: output, shape index: {0}]
  %s8 = inlined_call_operand.vmem [shape: f32[256,16], index: 8, kind: output, shape index: {1}]
  %9 = xla_tuple %s7, %s8
  %s10 = sld [smem:[#allocation0]]
  $region69: #{tpu_custom_call.1} parent=0
    _
  %s12 = ssub.s32 1, %s10
  %s13 = scalar_select 0, %s12, %s10
  loop: start=0, step=1, limit=4
  $region2: #{tpu_custom_call.1} parent=0 // loop_pre_header
    _
  $region3: #{tpu_custom_call.1} parent=0 // loop_header
    %s15 = sphi 0, %s19
    %p16 = scmp.ge.s32.totalorder %s15, 4
    %s25 = sphi 0, %s27
    %s28 = sphi 0, %s25
    %s29 = sphi 0, %s28
    %s45 = sphi 0, %s29
    %s49 = sphi 0, %s49
    %s51 = sphi 0, %s49
    %s52 = sphi 0, %s51
    %s66 = sphi 0, %s52
    %s70 = sphi 0, %s70
    %s72 = sphi 0, %s70
    %s73 = sphi 0, %s72
    %s87 = sphi 0, %s73
    %s91 = sphi 0, %s91
    %s93 = sphi 0, %s91
    %s94 = sphi 0, %s93
    %s108 = sphi 0, %s94
    %s112 = sphi 0, %s112
    %s114 = sphi 0, %s112
    %s115 = sphi 0, %s114
    %s129 = sphi 0, %s115
    %s133 = sphi 0, %s133
    %s135 = sphi 0, %s133
    %s136 = sphi 0, %s135
    %s150 = sphi 0, %s136
    %s154 = sphi 0, %s154
    %s156 = sphi 0, %s154
    %s157 = sphi 0, %s156
    %s171 = sphi 0, %s157
    %s177 = sphi 0, %s179
    %s180 = sphi 0, %s177
    %s181 = sphi 0, %s180
    %s197 = sphi 0, %s181
    %s203 = sphi 0, %s205
    %s206 = sphi 0, %s203
    %s207 = sphi 0, %s206
    %s223 = sphi 0, %s207
  $region4: #{tpu_custom_call.1} parent=0 // loop_header_branch
    %18 = sbr.rel (%p16) target = $region8
  $region5: #{tpu_custom_call.1} parent=0 // loop_body
    %s20 = ssub.s32 %s15, 1
    %s21 = ssub.s32 %s15, 2
    %s22 = sadd.s32 %s15, 1
    %s23 = ssub.s32 %s15, %s22
    %p24 = scmp.eq.s32.totalorder %s23, 0
    %s26 = sadd.s32 %s25, 1
    %s27 = scalar_select %p24, %s25, %s26
    %p30 = pneg %p24
    %p31 = scmp.eq.s32.totalorder %s15, 1
    %p32 = por %p30, %p31
    %p33 = scmp.ne.s32.totalorder %s25, %s28
    %p34 = scmp.eq.s32.totalorder %s15, 0
    %p35 = por %p33, %p34
    %p36 = scmp.ne.s32.totalorder %s25, %s28
    %p37 = scmp.eq.s32.totalorder %s20, 1
    %p38 = por %p36, %p37
    %p39 = scmp.ne.s32.totalorder %s28, %s29
    %p40 = scmp.eq.s32.totalorder %s20, 0
    %p41 = por %p39, %p40
    %p42 = scmp.ne.s32.totalorder %s28, %s29
    %p43 = scmp.eq.s32.totalorder %s21, 1
    %p44 = por %p42, %p43
    %p46 = scmp.ne.s32.totalorder %s29, %s45
    %p47 = scmp.eq.s32.totalorder %s21, 0
    %p48 = por %p46, %p47
    %s50 = sadd.s32 %s49, 1
    %p53 = scmp.eq.s32.totalorder %s15, 1
    %p54 = scmp.ne.s32.totalorder %s49, %s51
    %p55 = scmp.eq.s32.totalorder %s15, 0
    %p56 = por %p54, %p55
    %p57 = scmp.ne.s32.totalorder %s49, %s51
    %p58 = scmp.eq.s32.totalorder %s20, 1
    %p59 = por %p57, %p58
    %p60 = scmp.ne.s32.totalorder %s51, %s52
    %p61 = scmp.eq.s32.totalorder %s20, 0
    %p62 = por %p60, %p61
    %p63 = scmp.ne.s32.totalorder %s51, %s52
    %p64 = scmp.eq.s32.totalorder %s21, 1
    %p65 = por %p63, %p64
    %p67 = scmp.ne.s32.totalorder %s52, %s66
    %p68 = scmp.eq.s32.totalorder %s21, 0
    %p69 = por %p67, %p68
    %s71 = sadd.s32 %s70, 1
    %p74 = scmp.eq.s32.totalorder %s15, 1
    %p75 = scmp.ne.s32.totalorder %s70, %s72
    %p76 = scmp.eq.s32.totalorder %s15, 0
    %p77 = por %p75, %p76
    %p78 = scmp.ne.s32.totalorder %s70, %s72
    %p79 = scmp.eq.s32.totalorder %s20, 1
    %p80 = por %p78, %p79
    %p81 = scmp.ne.s32.totalorder %s72, %s73
    %p82 = scmp.eq.s32.totalorder %s20, 0
    %p83 = por %p81, %p82
    %p84 = scmp.ne.s32.totalorder %s72, %s73
    %p85 = scmp.eq.s32.totalorder %s21, 1
    %p86 = por %p84, %p85
    %p88 = scmp.ne.s32.totalorder %s73, %s87
    %p89 = scmp.eq.s32.totalorder %s21, 0
    %p90 = por %p88, %p89
    %s92 = sadd.s32 %s91, 1
    %p95 = scmp.eq.s32.totalorder %s15, 1
    %p96 = scmp.ne.s32.totalorder %s91, %s93
    %p97 = scmp.eq.s32.totalorder %s15, 0
    %p98 = por %p96, %p97
    %p99 = scmp.ne.s32.totalorder %s91, %s93
    %p100 = scmp.eq.s32.totalorder %s20, 1
    %p101 = por %p99, %p100
    %p102 = scmp.ne.s32.totalorder %s93, %s94
    %p103 = scmp.eq.s32.totalorder %s20, 0
    %p104 = por %p102, %p103
    %p105 = scmp.ne.s32.totalorder %s93, %s94
    %p106 = scmp.eq.s32.totalorder %s21, 1
    %p107 = por %p105, %p106
    %p109 = scmp.ne.s32.totalorder %s94, %s108
    %p110 = scmp.eq.s32.totalorder %s21, 0
    %p111 = por %p109, %p110
    %s113 = sadd.s32 %s112, 1
    %p116 = scmp.eq.s32.totalorder %s15, 1
    %p117 = scmp.ne.s32.totalorder %s112, %s114
    %p118 = scmp.eq.s32.totalorder %s15, 0
    %p119 = por %p117, %p118
    %p120 = scmp.ne.s32.totalorder %s112, %s114
    %p121 = scmp.eq.s32.totalorder %s20, 1
    %p122 = por %p120, %p121
    %p123 = scmp.ne.s32.totalorder %s114, %s115
    %p124 = scmp.eq.s32.totalorder %s20, 0
    %p125 = por %p123, %p124
    %p126 = scmp.ne.s32.totalorder %s114, %s115
    %p127 = scmp.eq.s32.totalorder %s21, 1
    %p128 = por %p126, %p127
    %p130 = scmp.ne.s32.totalorder %s115, %s129
    %p131 = scmp.eq.s32.totalorder %s21, 0
    %p132 = por %p130, %p131
    %s134 = sadd.s32 %s133, 1
    %p137 = scmp.eq.s32.totalorder %s15, 1
    %p138 = scmp.ne.s32.totalorder %s133, %s135
    %p139 = scmp.eq.s32.totalorder %s15, 0
    %p140 = por %p138, %p139
    %p141 = scmp.ne.s32.totalorder %s133, %s135
    %p142 = scmp.eq.s32.totalorder %s20, 1
    %p143 = por %p141, %p142
    %p144 = scmp.ne.s32.totalorder %s135, %s136
    %p145 = scmp.eq.s32.totalorder %s20, 0
    %p146 = por %p144, %p145
    %p147 = scmp.ne.s32.totalorder %s135, %s136
    %p148 = scmp.eq.s32.totalorder %s21, 1
    %p149 = por %p147, %p148
    %p151 = scmp.ne.s32.totalorder %s136, %s150
    %p152 = scmp.eq.s32.totalorder %s21, 0
    %p153 = por %p151, %p152
    %s155 = sadd.s32 %s154, 1
    %p158 = scmp.eq.s32.totalorder %s15, 1
    %p159 = scmp.ne.s32.totalorder %s154, %s156
    %p160 = scmp.eq.s32.totalorder %s15, 0
    %p161 = por %p159, %p160
    %p162 = scmp.ne.s32.totalorder %s154, %s156
    %p163 = scmp.eq.s32.totalorder %s20, 1
    %p164 = por %p162, %p163
    %p165 = scmp.ne.s32.totalorder %s156, %s157
    %p166 = scmp.eq.s32.totalorder %s20, 0
    %p167 = por %p165, %p166
    %p168 = scmp.ne.s32.totalorder %s156, %s157
    %p169 = scmp.eq.s32.totalorder %s21, 1
    %p170 = por %p168, %p169
    %p172 = scmp.ne.s32.totalorder %s157, %s171
    %p173 = scmp.eq.s32.totalorder %s21, 0
    %p174 = por %p172, %p173
    %s175 = ssub.s32 %s15, %s22
    %p176 = scmp.eq.s32.totalorder %s175, 0
    %s178 = sadd.s32 %s177, 1
    %s179 = scalar_select %p176, %s177, %s178
    %p182 = pneg %p176
    %p183 = scmp.eq.s32.totalorder %s15, 1
    %p184 = por %p182, %p183
    %p185 = scmp.ne.s32.totalorder %s177, %s180
    %p186 = scmp.eq.s32.totalorder %s15, 0
    %p187 = por %p185, %p186
    %p188 = scmp.ne.s32.totalorder %s177, %s180
    %p189 = scmp.eq.s32.totalorder %s20, 1
    %p190 = por %p188, %p189
    %p191 = scmp.ne.s32.totalorder %s180, %s181
    %p192 = scmp.eq.s32.totalorder %s20, 0
    %p193 = por %p191, %p192
    %p194 = scmp.ne.s32.totalorder %s180, %s181
    %p195 = scmp.eq.s32.totalorder %s21, 1
    %p196 = por %p194, %p195
    %p198 = scmp.ne.s32.totalorder %s181, %s197
    %p199 = scmp.eq.s32.totalorder %s21, 0
    %p200 = por %p198, %p199
    %s201 = ssub.s32 %s15, %s22
    %p202 = scmp.eq.s32.totalorder %s201, 0
    %s204 = sadd.s32 %s203, 1
    %s205 = scalar_select %p202, %s203, %s204
    %p208 = pneg %p202
    %p209 = scmp.eq.s32.totalorder %s15, 1
    %p210 = por %p208, %p209
    %p211 = scmp.ne.s32.totalorder %s203, %s206
    %p212 = scmp.eq.s32.totalorder %s15, 0
    %p213 = por %p211, %p212
    %p214 = scmp.ne.s32.totalorder %s203, %s206
    %p215 = scmp.eq.s32.totalorder %s20, 1
    %p216 = por %p214, %p215
    %p217 = scmp.ne.s32.totalorder %s206, %s207
    %p218 = scmp.eq.s32.totalorder %s20, 0
    %p219 = por %p217, %p218
    %p220 = scmp.ne.s32.totalorder %s206, %s207
    %p221 = scmp.eq.s32.totalorder %s21, 1
    %p222 = por %p220, %p221
    %p224 = scmp.ne.s32.totalorder %s207, %s223
    %p225 = scmp.eq.s32.totalorder %s21, 0
    %p226 = por %p224, %p225
    %p227 = scmp.le.s32.totalorder 1, %s15
    %p228 = scmp.lt.s32.totalorder %s15, 3
    %p229 = pnand %p227, %p228
    %p230 = pneg %p229
    // Predicated region
    $region9: #{tpu_custom_call.1} parent=5 // pred_check
      _
    $region10: #{tpu_custom_call.1} parent=5 // pred_check_branch
      %232 = sbr.rel (%p229) target = $region12
    $region11: #{tpu_custom_call.1} parent=5 // pred_region
      %s233 = ssub.s32 %s15, 1
      // Predicated region
      $region13: #{tpu_custom_call.1} parent=11 // pred_check
        %p234 = pneg %p62
      $region14: #{tpu_custom_call.1} parent=11 // pred_check_branch
        %236 = sbr.rel (%p234) target = $region16
      $region15: #{tpu_custom_call.1} parent=11 // pred_region
        _
      $region16: #{tpu_custom_call.1} parent=11 // pred_fallthru
        _
      // Predicated region
      $region17: #{tpu_custom_call.1} parent=11 // pred_check
        %p237 = pneg %p83
      $region18: #{tpu_custom_call.1} parent=11 // pred_check_branch
        %239 = sbr.rel (%p237) target = $region20
      $region19: #{tpu_custom_call.1} parent=11 // pred_region
        _
      $region20: #{tpu_custom_call.1} parent=11 // pred_fallthru
        _
      // Predicated region
      $region21: #{tpu_custom_call.1} parent=11 // pred_check
        %p240 = pneg %p104
      $region22: #{tpu_custom_call.1} parent=11 // pred_check_branch
        %242 = sbr.rel (%p240) target = $region24
      $region23: #{tpu_custom_call.1} parent=11 // pred_region
        _
      $region24: #{tpu_custom_call.1} parent=11 // pred_fallthru
        _
      // Predicated region
      $region25: #{tpu_custom_call.1} parent=11 // pred_check
        %p243 = pneg %p125
      $region26: #{tpu_custom_call.1} parent=11 // pred_check_branch
        %245 = sbr.rel (%p243) target = $region28
      $region27: #{tpu_custom_call.1} parent=11 // pred_region
        _
      $region28: #{tpu_custom_call.1} parent=11 // pred_fallthru
        _
      // Predicated region
      $region29: #{tpu_custom_call.1} parent=11 // pred_check
        %p246 = pneg %p146
      $region30: #{tpu_custom_call.1} parent=11 // pred_check_branch
        %248 = sbr.rel (%p246) target = $region32
      $region31: #{tpu_custom_call.1} parent=11 // pred_region
        _
      $region32: #{tpu_custom_call.1} parent=11 // pred_fallthru
        _
      // Predicated region
      $region33: #{tpu_custom_call.1} parent=11 // pred_check
        %p249 = pneg %p167
      $region34: #{tpu_custom_call.1} parent=11 // pred_check_branch
        %251 = sbr.rel (%p249) target = $region36
      $region35: #{tpu_custom_call.1} parent=11 // pred_region
        _
      $region36: #{tpu_custom_call.1} parent=11 // pred_fallthru
        _
    $region12: #{tpu_custom_call.1} parent=5 // pred_fallthru
      _
    %p252 = scmp.lt.s32.totalorder %s15, 2
    // Predicated region
    $region37: #{tpu_custom_call.1} parent=5 // pred_check
      %p253 = pneg %p252
    $region38: #{tpu_custom_call.1} parent=5 // pred_check_branch
      %255 = sbr.rel (%p253) target = $region40
    $region39: #{tpu_custom_call.1} parent=5 // pred_region
      // Predicated region
      $region41: #{tpu_custom_call.1} parent=39 // pred_check
        %p256 = pneg %p35
      $region42: #{tpu_custom_call.1} parent=39 // pred_check_branch
        %258 = sbr.rel (%p256) target = $region44
      $region43: #{tpu_custom_call.1} parent=39 // pred_region
        %s259 = smul.u32 16, %s15
        %p260 = scmp.lt.s32.totalorder %s259, 31
        %s261 = scalar_select %p260, %s259, 31
        %s262 = smul.addr %s261, 8
        %s263 = scalar_lea.vmem %s0, %s262
        %s264 = smul.u32 16, %s15
      $region44: #{tpu_custom_call.1} parent=39 // pred_fallthru
        _
    $region40: #{tpu_custom_call.1} parent=5 // pred_fallthru
      _
    %p265 = scmp.le.s32.totalorder 1, %s15
    %p266 = scmp.lt.s32.totalorder %s15, 3
    %p267 = pnand %p265, %p266
    %p268 = pneg %p267
    // Predicated region
    $region45: #{tpu_custom_call.1} parent=5 // pred_check
      _
    $region46: #{tpu_custom_call.1} parent=5 // pred_check_branch
      %270 = sbr.rel (%p267) target = $region48
    $region47: #{tpu_custom_call.1} parent=5 // pred_region
      %s271 = ssub.s32 %s15, 1
      %s272 = smul.u32 16, %s20
      %p273 = scmp.lt.s32.totalorder %s272, 31
      %s274 = scalar_select %p273, %s272, 31
      %s275 = smul.addr %s274, 8
      %s276 = scalar_lea.vmem %s0, %s275
      %p277 = pneg %p41
      %p278 = pneg %p38
      %p279 = pneg %p62
      %p280 = pneg %p59
      %p281 = pneg %p83
      %p282 = pneg %p80
      %p283 = pneg %p104
      %p284 = pneg %p101
      %p285 = pneg %p125
      %p286 = pneg %p122
      %p287 = pneg %p146
      %p288 = pneg %p143
      %p289 = pneg %p167
      %p290 = pneg %p164
      %p291 = pneg %p193
      %p292 = pneg %p190
      %s293 = smul.u32 16, %s20
      %p294 = scmp.lt.s32.totalorder %s293, 31
      %s295 = scalar_select %p294, %s293, 31
      %s296 = smul.addr %s295, 8
      %s297 = scalar_lea.vmem %s7, %s296
      %p298 = pneg %p219
      %p299 = pneg %p216
      %s300 = smul.u32 16, %s20
      %p301 = scmp.lt.s32.totalorder %s300, 31
      %s302 = scalar_select %p301, %s300, 31
      %s303 = smul.addr %s302, 8
      %s304 = scalar_lea.vmem %s8, %s303
      %s305 = smul.u32 16, %s20
      %p306 = scmp.lt.s32.totalorder %s305, 31
      %s307 = scalar_select %p306, %s305, 31
      %s308 = smul.addr %s307, 8
      %s309 = scalar_lea.vmem %s0, %s308
      %s310 = smul.u32 16, %s20
      %s311 = smul.u32 16, %s20
      %p312 = scmp.lt.s32.totalorder %s311, 31
      %s313 = scalar_select %p312, %s311, 31
      %s314 = smul.addr %s313, 8
      %s315 = scalar_lea.vmem %s7, %s314
      %s316 = smul.u32 16, %s20
      %s317 = smul.u32 16, %s20
      %p318 = scmp.lt.s32.totalorder %s317, 31
      %s319 = scalar_select %p318, %s317, 31
      %s320 = smul.addr %s319, 8
      %s321 = scalar_lea.vmem %s8, %s320
      %s322 = smul.u32 16, %s20
      %v324 = vld [vmem:[%s309] sm:$0xff]
      %v325 = vld [vmem:[%s309 + $0x8] sm:$0xff]
      %v326 = vld [vmem:[%s309 + $0x10] sm:$0xff]
      %v327 = vld [vmem:[%s309 + $0x18] sm:$0xff]
      %v328 = vld [vmem:[%s309 + $0x20] sm:$0xff]
      %v329 = vld [vmem:[%s309 + $0x28] sm:$0xff]
      %v330 = vld [vmem:[%s309 + $0x30] sm:$0xff]
      %v331 = vld [vmem:[%s309 + $0x38] sm:$0xff]
      %v332 = vld [vmem:[%s309 + $0x40] sm:$0xff]
      %v333 = vld [vmem:[%s309 + $0x48] sm:$0xff]
      %v334 = vld [vmem:[%s309 + $0x50] sm:$0xff]
      %v335 = vld [vmem:[%s309 + $0x58] sm:$0xff]
      %v336 = vld [vmem:[%s309 + $0x60] sm:$0xff]
      %v337 = vld [vmem:[%s309 + $0x68] sm:$0xff]
      %v338 = vld [vmem:[%s309 + $0x70] sm:$0xff]
      %v339 = vld [vmem:[%s309 + $0x78] sm:$0xff]
      %v340 = vpack.c.bf16 %v325, %v324
      %v341 = vpack.c.bf16 %v327, %v326
      %v342 = vpack.c.bf16 %v329, %v328
      %v343 = vpack.c.bf16 %v331, %v330
      %v344 = vpack.c.bf16 %v333, %v332
      %v345 = vpack.c.bf16 %v335, %v334
      %v346 = vpack.c.bf16 %v337, %v336
      %v347 = vpack.c.bf16 %v339, %v338
      %v348 = vld [vmem:[%s1] sm:$0xf]
      %v349 = vld [vmem:[%s1 + $0x4] sm:$0xf]
      %v350 = vld [vmem:[%s2] sm:$0x1]
      %v352 = vperm.slane %v350, 0
      %v356 = vunpack.c.l.b16 %v348
      %v357 = vunpack.c.l.b16 %v349
      %v358 = vpack.c.b16 %v357, %v356
      %vm360 = vcmask 130048
      %v362 = vsel %vm360, %v340, 0
      %v365 = vsel %vm360, %v341, 0
      %v368 = vsel %vm360, %v342, 0
      %v371 = vsel %vm360, %v343, 0
      %v374 = vsel %vm360, %v344, 0
      %v377 = vsel %vm360, %v345, 0
      %v380 = vsel %vm360, %v346, 0
      %v383 = vsel %vm360, %v347, 0
      %385 = vmatpush.bf16.msra.mxu0 0
      %386 = vmatpush.bf16.msra.mxu0 0
      %387 = vmatpush.bf16.msra.mxu0 0
      %388 = vmatpush.bf16.msra.mxu0 0
      %389 = vmatpush.bf16.msra.mxu0 0
      %390 = vmatpush.bf16.msra.mxu0 0
      %391 = vmatpush.bf16.msra.mxu0 0
      %392 = vmatpush.bf16.msra.mxu0 %v358
      %393 = vmatmul.bf16.gmra.mxu0 %v362
      %v394 = vpop.f32.mrf.mxu0
      %v395 = vadd.f32 %v352, %v394
      %v396 = vpop.f32.mrf.mxu0
      %v397 = vadd.f32 %v352, %v396
      %398 = vmatmul.bf16.gmra.mxu0 %v365
      %v399 = vpop.f32.mrf.mxu0
      %v400 = vadd.f32 %v352, %v399
      %v401 = vpop.f32.mrf.mxu0
      %v402 = vadd.f32 %v352, %v401
      %403 = vmatmul.bf16.gmra.mxu0 %v368
      %v404 = vpop.f32.mrf.mxu0
      %v405 = vadd.f32 %v352, %v404
      %v406 = vpop.f32.mrf.mxu0
      %v407 = vadd.f32 %v352, %v406
      %408 = vmatmul.bf16.gmra.mxu0 %v371
      %v409 = vpop.f32.mrf.mxu0
      %v410 = vadd.f32 %v352, %v409
      %v411 = vpop.f32.mrf.mxu0
      %v412 = vadd.f32 %v352, %v411
      %413 = vmatmul.bf16.gmra.mxu0 %v374
      %v414 = vpop.f32.mrf.mxu0
      %v415 = vadd.f32 %v352, %v414
      %v416 = vpop.f32.mrf.mxu0
      %v417 = vadd.f32 %v352, %v416
      %418 = vmatmul.bf16.gmra.mxu0 %v377
      %v419 = vpop.f32.mrf.mxu0
      %v420 = vadd.f32 %v352, %v419
      %v421 = vpop.f32.mrf.mxu0
      %v422 = vadd.f32 %v352, %v421
      %423 = vmatmul.bf16.gmra.mxu0 %v380
      %v424 = vpop.f32.mrf.mxu0
      %v425 = vadd.f32 %v352, %v424
      %v426 = vpop.f32.mrf.mxu0
      %v427 = vadd.f32 %v352, %v426
      %428 = vmatmul.bf16.gmra.mxu0 %v383
      %v429 = vpop.f32.mrf.mxu0
      %v430 = vadd.f32 %v352, %v429
      %v431 = vpop.f32.mrf.mxu0
      %v432 = vadd.f32 %v352, %v431
      %433 = vdwg.mxu0
      %v434 = vmax.f32 %v395, 0.0
      %v435 = vmax.f32 %v397, 0.0
      %v436 = vmax.f32 %v400, 0.0
      %v437 = vmax.f32 %v402, 0.0
      %v438 = vmax.f32 %v405, 0.0
      %v439 = vmax.f32 %v407, 0.0
      %v440 = vmax.f32 %v410, 0.0
      %v441 = vmax.f32 %v412, 0.0
      %v442 = vmax.f32 %v415, 0.0
      %v443 = vmax.f32 %v417, 0.0
      %v444 = vmax.f32 %v420, 0.0
      %v445 = vmax.f32 %v422, 0.0
      %v446 = vmax.f32 %v425, 0.0
      %v447 = vmax.f32 %v427, 0.0
      %v448 = vmax.f32 %v430, 0.0
      %v449 = vmax.f32 %v432, 0.0
      %v450 = vpack.c.bf16 %v435, %v434
      %v451 = vpack.c.bf16 %v437, %v436
      %v452 = vpack.c.bf16 %v439, %v438
      %v453 = vpack.c.bf16 %v441, %v440
      %v454 = vpack.c.bf16 %v443, %v442
      %v455 = vpack.c.bf16 %v445, %v444
      %v456 = vpack.c.bf16 %v447, %v446
      %v457 = vpack.c.bf16 %v449, %v448
      %v458 = vld [vmem:[%s3] sm:$0xf]
      %v459 = vld [vmem:[%s3 + $0x4] sm:$0xf]
      %v460 = vld [vmem:[%s3 + $0x8] sm:$0xf]
      %v461 = vld [vmem:[%s3 + $0xc] sm:$0xf]
      %v462 = vld [vmem:[%s4] sm:$0x1]
      %v464 = vperm.slane %v462, 0
      %v470 = vunpack.c.l.b16 %v458
      %v471 = vunpack.c.l.b16 %v459
      %v472 = vunpack.c.l.b16 %v460
      %v473 = vunpack.c.l.b16 %v461
      %v474 = vpack.c.b16 %v471, %v470
      %v475 = vpack.c.b16 %v473, %v472
      %vm478 = vcmask 261120
      %v480 = vsel %vm478, %v450, 0
      %v483 = vsel %vm478, %v451, 0
      %v486 = vsel %vm478, %v452, 0
      %v489 = vsel %vm478, %v453, 0
      %v492 = vsel %vm478, %v454, 0
      %v495 = vsel %vm478, %v455, 0
      %v498 = vsel %vm478, %v456, 0
      %v501 = vsel %vm478, %v457, 0
      %503 = vmatpush.bf16.msra.mxu0 0
      %504 = vmatpush.bf16.msra.mxu0 0
      %505 = vmatpush.bf16.msra.mxu0 0
      %506 = vmatpush.bf16.msra.mxu0 0
      %507 = vmatpush.bf16.msra.mxu0 0
      %508 = vmatpush.bf16.msra.mxu0 0
      %509 = vmatpush.bf16.msra.mxu0 %v475
      %510 = vmatpush.bf16.msra.mxu0 %v474
      %511 = vmatmul.bf16.gmra.mxu0 %v480
      %v512 = vpop.f32.mrf.mxu0
      %v513 = vadd.f32 %v464, %v512
      %v514 = vpop.f32.mrf.mxu0
      %v515 = vadd.f32 %v464, %v514
      %516 = vmatmul.bf16.gmra.mxu0 %v483
      %v517 = vpop.f32.mrf.mxu0
      %v518 = vadd.f32 %v464, %v517
      %v519 = vpop.f32.mrf.mxu0
      %v520 = vadd.f32 %v464, %v519
      %521 = vmatmul.bf16.gmra.mxu0 %v486
      %v522 = vpop.f32.mrf.mxu0
      %v523 = vadd.f32 %v464, %v522
      %v524 = vpop.f32.mrf.mxu0
      %v525 = vadd.f32 %v464, %v524
      %526 = vmatmul.bf16.gmra.mxu0 %v489
      %v527 = vpop.f32.mrf.mxu0
      %v528 = vadd.f32 %v464, %v527
      %v529 = vpop.f32.mrf.mxu0
      %v530 = vadd.f32 %v464, %v529
      %531 = vmatmul.bf16.gmra.mxu0 %v492
      %v532 = vpop.f32.mrf.mxu0
      %v533 = vadd.f32 %v464, %v532
      %v534 = vpop.f32.mrf.mxu0
      %v535 = vadd.f32 %v464, %v534
      %536 = vmatmul.bf16.gmra.mxu0 %v495
      %v537 = vpop.f32.mrf.mxu0
      %v538 = vadd.f32 %v464, %v537
      %v539 = vpop.f32.mrf.mxu0
      %v540 = vadd.f32 %v464, %v539
      %541 = vmatmul.bf16.gmra.mxu0 %v498
      %v542 = vpop.f32.mrf.mxu0
      %v543 = vadd.f32 %v464, %v542
      %v544 = vpop.f32.mrf.mxu0
      %v545 = vadd.f32 %v464, %v544
      %546 = vmatmul.bf16.gmra.mxu0 %v501
      %v547 = vpop.f32.mrf.mxu0
      %v548 = vadd.f32 %v464, %v547
      %v549 = vpop.f32.mrf.mxu0
      %v550 = vadd.f32 %v464, %v549
      %551 = vdwg.mxu0
      %v552 = vsel %vm360, %v513, -inf
      %553 = vmax.xlane.f32.xlu0 %v552
      %v554 = vpop.xlane.xlu0 %553
      %v555 = vsel %vm360, %v515, -inf
      %556 = vmax.xlane.f32.xlu0 %v555
      %v557 = vpop.xlane.xlu0 %556
      %v558 = vsel %vm360, %v518, -inf
      %559 = vmax.xlane.f32.xlu0 %v558
      %v560 = vpop.xlane.xlu0 %559
      %v561 = vsel %vm360, %v520, -inf
      %562 = vmax.xlane.f32.xlu0 %v561
      %v563 = vpop.xlane.xlu0 %562
      %v564 = vsel %vm360, %v523, -inf
      %565 = vmax.xlane.f32.xlu0 %v564
      %v566 = vpop.xlane.xlu0 %565
      %v567 = vsel %vm360, %v525, -inf
      %568 = vmax.xlane.f32.xlu0 %v567
      %v569 = vpop.xlane.xlu0 %568
      %v570 = vsel %vm360, %v528, -inf
      %571 = vmax.xlane.f32.xlu0 %v570
      %v572 = vpop.xlane.xlu0 %571
      %v573 = vsel %vm360, %v530, -inf
      %574 = vmax.xlane.f32.xlu0 %v573
      %v575 = vpop.xlane.xlu0 %574
      %v576 = vsel %vm360, %v533, -inf
      %577 = vmax.xlane.f32.xlu0 %v576
      %v578 = vpop.xlane.xlu0 %577
      %v579 = vsel %vm360, %v535, -inf
      %580 = vmax.xlane.f32.xlu0 %v579
      %v581 = vpop.xlane.xlu0 %580
      %v582 = vsel %vm360, %v538, -inf
      %583 = vmax.xlane.f32.xlu0 %v582
      %v584 = vpop.xlane.xlu0 %583
      %v585 = vsel %vm360, %v540, -inf
      %586 = vmax.xlane.f32.xlu0 %v585
      %v587 = vpop.xlane.xlu0 %586
      %v588 = vsel %vm360, %v543, -inf
      %589 = vmax.xlane.f32.xlu0 %v588
      %v590 = vpop.xlane.xlu0 %589
      %v591 = vsel %vm360, %v545, -inf
      %592 = vmax.xlane.f32.xlu0 %v591
      %v593 = vpop.xlane.xlu0 %592
      %v594 = vsel %vm360, %v548, -inf
      %595 = vmax.xlane.f32.xlu0 %v594
      %v596 = vpop.xlane.xlu0 %595
      %v597 = vsel %vm360, %v550, -inf
      %598 = vmax.xlane.f32.xlu0 %v597
      %v599 = vpop.xlane.xlu0 %598
      %v600 = vsub.f32 %v513, %v554
      %v601 = vsub.f32 %v515, %v557
      %v602 = vsub.f32 %v518, %v560
      %v603 = vsub.f32 %v520, %v563
      %v604 = vsub.f32 %v523, %v566
      %v605 = vsub.f32 %v525, %v569
      %v606 = vsub.f32 %v528, %v572
      %v607 = vsub.f32 %v530, %v575
      %v608 = vsub.f32 %v533, %v578
      %v609 = vsub.f32 %v535, %v581
      %v610 = vsub.f32 %v538, %v584
      %v611 = vsub.f32 %v540, %v587
      %v612 = vsub.f32 %v543, %v590
      %v613 = vsub.f32 %v545, %v593
      %v614 = vsub.f32 %v548, %v596
      %v615 = vsub.f32 %v550, %v599
      %v616 = vmul.f32 %v600, 1.442695
      %v617 = vpow.pop %v616
      %v618 = vmul.f32 %v601, 1.442695
      %v619 = vpow.pop %v618
      %v620 = vmul.f32 %v602, 1.442695
      %v621 = vpow.pop %v620
      %v622 = vmul.f32 %v603, 1.442695
      %v623 = vpow.pop %v622
      %v624 = vmul.f32 %v604, 1.442695
      %v625 = vpow.pop %v624
      %v626 = vmul.f32 %v605, 1.442695
      %v627 = vpow.pop %v626
      %v628 = vmul.f32 %v606, 1.442695
      %v629 = vpow.pop %v628
      %v630 = vmul.f32 %v607, 1.442695
      %v631 = vpow.pop %v630
      %v632 = vmul.f32 %v608, 1.442695
      %v633 = vpow.pop %v632
      %v634 = vmul.f32 %v609, 1.442695
      %v635 = vpow.pop %v634
      %v636 = vmul.f32 %v610, 1.442695
      %v637 = vpow.pop %v636
      %v638 = vmul.f32 %v611, 1.442695
      %v639 = vpow.pop %v638
      %v640 = vmul.f32 %v612, 1.442695
      %v641 = vpow.pop %v640
      %v642 = vmul.f32 %v613, 1.442695
      %v643 = vpow.pop %v642
      %v644 = vmul.f32 %v614, 1.442695
      %v645 = vpow.pop %v644
      %v646 = vmul.f32 %v615, 1.442695
      %v647 = vpow.pop %v646
      %v648 = vsel %vm360, %v617, 0.0
      %649 = vadd.xlane.f32.xlu0 %v648
      %v650 = vpop.xlane.xlu0 %649
      %v651 = vsel %vm360, %v619, 0.0
      %652 = vadd.xlane.f32.xlu0 %v651
      %v653 = vpop.xlane.xlu0 %652
      %v654 = vsel %vm360, %v621, 0.0
      %655 = vadd.xlane.f32.xlu0 %v654
      %v656 = vpop.xlane.xlu0 %655
      %v657 = vsel %vm360, %v623, 0.0
      %658 = vadd.xlane.f32.xlu0 %v657
      %v659 = vpop.xlane.xlu0 %658
      %v660 = vsel %vm360, %v625, 0.0
      %661 = vadd.xlane.f32.xlu0 %v660
      %v662 = vpop.xlane.xlu0 %661
      %v663 = vsel %vm360, %v627, 0.0
      %664 = vadd.xlane.f32.xlu0 %v663
      %v665 = vpop.xlane.xlu0 %664
      %v666 = vsel %vm360, %v629, 0.0
      %667 = vadd.xlane.f32.xlu0 %v666
      %v668 = vpop.xlane.xlu0 %667
      %v669 = vsel %vm360, %v631, 0.0
      %670 = vadd.xlane.f32.xlu0 %v669
      %v671 = vpop.xlane.xlu0 %670
      %v672 = vsel %vm360, %v633, 0.0
      %673 = vadd.xlane.f32.xlu0 %v672
      %v674 = vpop.xlane.xlu0 %673
      %v675 = vsel %vm360, %v635, 0.0
      %676 = vadd.xlane.f32.xlu0 %v675
      %v677 = vpop.xlane.xlu0 %676
      %v678 = vsel %vm360, %v637, 0.0
      %679 = vadd.xlane.f32.xlu0 %v678
      %v680 = vpop.xlane.xlu0 %679
      %v681 = vsel %vm360, %v639, 0.0
      %682 = vadd.xlane.f32.xlu0 %v681
      %v683 = vpop.xlane.xlu0 %682
      %v684 = vsel %vm360, %v641, 0.0
      %685 = vadd.xlane.f32.xlu0 %v684
      %v686 = vpop.xlane.xlu0 %685
      %v687 = vsel %vm360, %v643, 0.0
      %688 = vadd.xlane.f32.xlu0 %v687
      %v689 = vpop.xlane.xlu0 %688
      %v690 = vsel %vm360, %v645, 0.0
      %691 = vadd.xlane.f32.xlu0 %v690
      %v692 = vpop.xlane.xlu0 %691
      %v693 = vsel %vm360, %v647, 0.0
      %694 = vadd.xlane.f32.xlu0 %v693
      %v695 = vpop.xlane.xlu0 %694
      %v696 = vrcp.pop %v650
      %v697 = vrcp.pop %v653
      %v698 = vrcp.pop %v656
      %v699 = vrcp.pop %v659
      %v700 = vrcp.pop %v662
      %v701 = vrcp.pop %v665
      %v702 = vrcp.pop %v668
      %v703 = vrcp.pop %v671
      %v704 = vrcp.pop %v674
      %v705 = vrcp.pop %v677
      %v706 = vrcp.pop %v680
      %v707 = vrcp.pop %v683
      %v708 = vrcp.pop %v686
      %v709 = vrcp.pop %v689
      %v710 = vrcp.pop %v692
      %v711 = vrcp.pop %v695
      %v712 = vmul.f32 %v617, %v696
      %v713 = vmul.f32 %v619, %v697
      %v714 = vmul.f32 %v621, %v698
      %v715 = vmul.f32 %v623, %v699
      %v716 = vmul.f32 %v625, %v700
      %v717 = vmul.f32 %v627, %v701
      %v718 = vmul.f32 %v629, %v702
      %v719 = vmul.f32 %v631, %v703
      %v720 = vmul.f32 %v633, %v704
      %v721 = vmul.f32 %v635, %v705
      %v722 = vmul.f32 %v637, %v706
      %v723 = vmul.f32 %v639, %v707
      %v724 = vmul.f32 %v641, %v708
      %v725 = vmul.f32 %v643, %v709
      %v726 = vmul.f32 %v645, %v710
      %v727 = vmul.f32 %v647, %v711
      %v728 = vmul.f32 %v324, %v712
      %v729 = vmul.f32 %v325, %v713
      %v730 = vmul.f32 %v326, %v714
      %v731 = vmul.f32 %v327, %v715
      %v732 = vmul.f32 %v328, %v716
      %v733 = vmul.f32 %v329, %v717
      %v734 = vmul.f32 %v330, %v718
      %v735 = vmul.f32 %v331, %v719
      %v736 = vmul.f32 %v332, %v720
      %v737 = vmul.f32 %v333, %v721
      %v738 = vmul.f32 %v334, %v722
      %v739 = vmul.f32 %v335, %v723
      %v740 = vmul.f32 %v336, %v724
      %v741 = vmul.f32 %v337, %v725
      %v742 = vmul.f32 %v338, %v726
      %v743 = vmul.f32 %v339, %v727
      %v744 = vpack.c.bf16 %v729, %v728
      %v745 = vpack.c.bf16 %v731, %v730
      %v746 = vpack.c.bf16 %v733, %v732
      %v747 = vpack.c.bf16 %v735, %v734
      %v748 = vpack.c.bf16 %v737, %v736
      %v749 = vpack.c.bf16 %v739, %v738
      %v750 = vpack.c.bf16 %v741, %v740
      %v751 = vpack.c.bf16 %v743, %v742
      %v752 = vld [vmem:[%s5] sm:$0xf]
      %v753 = vld [vmem:[%s5 + $0x4] sm:$0xf]
      %v754 = vld [vmem:[%s6] sm:$0x1]
      %v756 = vperm.slane %v754, 0
      %v760 = vunpack.c.l.b16 %v752
      %v761 = vunpack.c.l.b16 %v753
      %v762 = vpack.c.b16 %v761, %v760
      %v765 = vsel %vm360, %v744, 0
      %v768 = vsel %vm360, %v745, 0
      %v771 = vsel %vm360, %v746, 0
      %v774 = vsel %vm360, %v747, 0
      %v777 = vsel %vm360, %v748, 0
      %v780 = vsel %vm360, %v749, 0
      %v783 = vsel %vm360, %v750, 0
      %v786 = vsel %vm360, %v751, 0
      %788 = vmatpush.bf16.msra.mxu0 0
      %789 = vmatpush.bf16.msra.mxu0 0
      %790 = vmatpush.bf16.msra.mxu0 0
      %791 = vmatpush.bf16.msra.mxu0 0
      %792 = vmatpush.bf16.msra.mxu0 0
      %793 = vmatpush.bf16.msra.mxu0 0
      %794 = vmatpush.bf16.msra.mxu0 0
      %795 = vmatpush.bf16.msra.mxu0 %v762
      %796 = vmatmul.bf16.gmra.mxu0 %v765
      %v797 = vpop.f32.mrf.mxu0
      %v798 = vadd.f32 %v756, %v797
      %v799 = vpop.f32.mrf.mxu0
      %v800 = vadd.f32 %v756, %v799
      %801 = vmatmul.bf16.gmra.mxu0 %v768
      %v802 = vpop.f32.mrf.mxu0
      %v803 = vadd.f32 %v756, %v802
      %v804 = vpop.f32.mrf.mxu0
      %v805 = vadd.f32 %v756, %v804
      %806 = vmatmul.bf16.gmra.mxu0 %v771
      %v807 = vpop.f32.mrf.mxu0
      %v808 = vadd.f32 %v756, %v807
      %v809 = vpop.f32.mrf.mxu0
      %v810 = vadd.f32 %v756, %v809
      %811 = vmatmul.bf16.gmra.mxu0 %v774
      %v812 = vpop.f32.mrf.mxu0
      %v813 = vadd.f32 %v756, %v812
      %v814 = vpop.f32.mrf.mxu0
      %v815 = vadd.f32 %v756, %v814
      %816 = vmatmul.bf16.gmra.mxu0 %v777
      %v817 = vpop.f32.mrf.mxu0
      %v818 = vadd.f32 %v756, %v817
      %v819 = vpop.f32.mrf.mxu0
      %v820 = vadd.f32 %v756, %v819
      %821 = vmatmul.bf16.gmra.mxu0 %v780
      %v822 = vpop.f32.mrf.mxu0
      %v823 = vadd.f32 %v756, %v822
      %v824 = vpop.f32.mrf.mxu0
      %v825 = vadd.f32 %v756, %v824
      %826 = vmatmul.bf16.gmra.mxu0 %v783
      %v827 = vpop.f32.mrf.mxu0
      %v828 = vadd.f32 %v756, %v827
      %v829 = vpop.f32.mrf.mxu0
      %v830 = vadd.f32 %v756, %v829
      %831 = vmatmul.bf16.gmra.mxu0 %v786
      %v832 = vpop.f32.mrf.mxu0
      %v833 = vadd.f32 %v756, %v832
      %v834 = vpop.f32.mrf.mxu0
      %v835 = vadd.f32 %v756, %v834
      %836 = vdwg.mxu0
      %vm837 = vcmask 23552
      %838 = vst.msk [vmem:[%s315] sm:$0xff] %vm837, %v798
      %839 = vst.msk [vmem:[%s315 + $0x8] sm:$0xff] %vm837, %v800
      %840 = vst.msk [vmem:[%s315 + $0x10] sm:$0xff] %vm837, %v803
      %841 = vst.msk [vmem:[%s315 + $0x18] sm:$0xff] %vm837, %v805
      %842 = vst.msk [vmem:[%s315 + $0x20] sm:$0xff] %vm837, %v808
      %843 = vst.msk [vmem:[%s315 + $0x28] sm:$0xff] %vm837, %v810
      %844 = vst.msk [vmem:[%s315 + $0x30] sm:$0xff] %vm837, %v813
      %845 = vst.msk [vmem:[%s315 + $0x38] sm:$0xff] %vm837, %v815
      %846 = vst.msk [vmem:[%s315 + $0x40] sm:$0xff] %vm837, %v818
      %847 = vst.msk [vmem:[%s315 + $0x48] sm:$0xff] %vm837, %v820
      %848 = vst.msk [vmem:[%s315 + $0x50] sm:$0xff] %vm837, %v823
      %849 = vst.msk [vmem:[%s315 + $0x58] sm:$0xff] %vm837, %v825
      %850 = vst.msk [vmem:[%s315 + $0x60] sm:$0xff] %vm837, %v828
      %851 = vst.msk [vmem:[%s315 + $0x68] sm:$0xff] %vm837, %v830
      %852 = vst.msk [vmem:[%s315 + $0x70] sm:$0xff] %vm837, %v833
      %853 = vst.msk [vmem:[%s315 + $0x78] sm:$0xff] %vm837, %v835
      %854 = vst.msk [vmem:[%s321] sm:$0xff] %vm360, %v712
      %855 = vst.msk [vmem:[%s321 + $0x8] sm:$0xff] %vm360, %v713
      %856 = vst.msk [vmem:[%s321 + $0x10] sm:$0xff] %vm360, %v714
      %857 = vst.msk [vmem:[%s321 + $0x18] sm:$0xff] %vm360, %v715
      %858 = vst.msk [vmem:[%s321 + $0x20] sm:$0xff] %vm360, %v716
      %859 = vst.msk [vmem:[%s321 + $0x28] sm:$0xff] %vm360, %v717
      %860 = vst.msk [vmem:[%s321 + $0x30] sm:$0xff] %vm360, %v718
      %861 = vst.msk [vmem:[%s321 + $0x38] sm:$0xff] %vm360, %v719
      %862 = vst.msk [vmem:[%s321 + $0x40] sm:$0xff] %vm360, %v720
      %863 = vst.msk [vmem:[%s321 + $0x48] sm:$0xff] %vm360, %v721
      %864 = vst.msk [vmem:[%s321 + $0x50] sm:$0xff] %vm360, %v722
      %865 = vst.msk [vmem:[%s321 + $0x58] sm:$0xff] %vm360, %v723
      %866 = vst.msk [vmem:[%s321 + $0x60] sm:$0xff] %vm360, %v724
      %867 = vst.msk [vmem:[%s321 + $0x68] sm:$0xff] %vm360, %v725
      %868 = vst.msk [vmem:[%s321 + $0x70] sm:$0xff] %vm360, %v726
      %869 = vst.msk [vmem:[%s321 + $0x78] sm:$0xff] %vm360, %v727
      %s870 = smul.u32 16, %s20
      %p871 = scmp.lt.s32.totalorder %s870, 31
      %s872 = scalar_select %p871, %s870, 31
      %s873 = smul.addr %s872, 8
      %s874 = scalar_lea.vmem %s7, %s873
      %s875 = smul.u32 16, %s20
      %p876 = scmp.lt.s32.totalorder %s875, 31
      %s877 = scalar_select %p876, %s875, 31
      %s878 = smul.addr %s877, 8
      %s879 = scalar_lea.vmem %s8, %s878
      // Predicated region
      $region49: #{tpu_custom_call.1} parent=47 // pred_check
        %p880 = pneg %p190
      $region50: #{tpu_custom_call.1} parent=47 // pred_check_branch
        %882 = sbr.rel (%p880) target = $region52
      $region51: #{tpu_custom_call.1} parent=47 // pred_region
        %s883 = smul.u32 16, %s20
      $region52: #{tpu_custom_call.1} parent=47 // pred_fallthru
        _
      // Predicated region
      $region53: #{tpu_custom_call.1} parent=47 // pred_check
        %p884 = pneg %p216
      $region54: #{tpu_custom_call.1} parent=47 // pred_check_branch
        %886 = sbr.rel (%p884) target = $region56
      $region55: #{tpu_custom_call.1} parent=47 // pred_region
        %s887 = smul.u32 16, %s20
      $region56: #{tpu_custom_call.1} parent=47 // pred_fallthru
        _
    $region48: #{tpu_custom_call.1} parent=5 // pred_fallthru
      _
    %p888 = scmp.le.s32.totalorder 2, %s15
    // Predicated region
    $region57: #{tpu_custom_call.1} parent=5 // pred_check
      %p889 = pneg %p888
    $region58: #{tpu_custom_call.1} parent=5 // pred_check_branch
      %891 = sbr.rel (%p889) target = $region60
    $region59: #{tpu_custom_call.1} parent=5 // pred_region
      %s892 = ssub.s32 %s15, 2
      // Predicated region
      $region61: #{tpu_custom_call.1} parent=59 // pred_check
        %p893 = pneg %p196
      $region62: #{tpu_custom_call.1} parent=59 // pred_check_branch
        %895 = sbr.rel (%p893) target = $region64
      $region63: #{tpu_custom_call.1} parent=59 // pred_region
        %s896 = smul.u32 16, %s21
        %p897 = scmp.lt.s32.totalorder %s896, 31
        %s898 = scalar_select %p897, %s896, 31
        %s899 = smul.addr %s898, 8
        %s900 = scalar_lea.vmem %s7, %s899
      $region64: #{tpu_custom_call.1} parent=59 // pred_fallthru
        _
      // Predicated region
      $region65: #{tpu_custom_call.1} parent=59 // pred_check
        %p901 = pneg %p222
      $region66: #{tpu_custom_call.1} parent=59 // pred_check_branch
        %903 = sbr.rel (%p901) target = $region68
      $region67: #{tpu_custom_call.1} parent=59 // pred_region
        %s904 = smul.u32 16, %s21
        %p905 = scmp.lt.s32.totalorder %s904, 31
        %s906 = scalar_select %p905, %s904, 31
        %s907 = smul.addr %s906, 8
        %s908 = scalar_lea.vmem %s8, %s907
      $region68: #{tpu_custom_call.1} parent=59 // pred_fallthru
        _
    $region60: #{tpu_custom_call.1} parent=5 // pred_fallthru
      _
  $region6: #{tpu_custom_call.1} parent=0 // loop_footer
    %s19 = sadd.s32 1, %s15
  $region7: #{tpu_custom_call.1} parent=0 // loop_footer_branch
    %14 = sbr.rel target = $region3
  $region8: #{tpu_custom_call.1} parent=0 // loop_exit
    _

</llo_original>
